<compile_context>
chip_gen: v6e
topology: v6e:2x2x1
jax: 0.10.0
libtpu: 0.0.40
codegen_flags: <defaults>
</compile_context>

<pallas_src>
import functools

import jax
import jax.numpy as jnp
import numpy as np
from jax.experimental import pallas as pl
from jax.experimental.pallas import tpu as pltpu


def _round_up(v, m):
    return (v + m - 1) // m * m


def _build_projection(N, L):
    """Host-side constant mapping concat([p, logp*p]) -> [taus | tausBis | entropy].

    Row layout (2N rows):
      rows [0, N)   multiply p      (softmax probabilities)
      rows [N, 2N)  multiply q=logp*p
    Column layout (L = 2N+2 columns):
      cols [0, N]          : taus_c     = sum_{j<c} p_j            (c = 0..N)
      cols [N+1, 2N]       : tausBis_i  = sum_{j<i} p_j + 0.5 p_i  (i = 0..N-1)
      col  2N+1            : entropy    = -sum_j (logp_j * p_j)
    """
    P = np.zeros((2 * N, L), np.float32)
    for c in range(N + 1):                      # taus (exclusive cumsum incl. leading 0)
        P[:c, c] = 1.0
    for i in range(N):                          # tausBis = exclusive cumsum + 0.5 * p_i
        P[:i, N + 1 + i] = 1.0
        P[i, N + 1 + i] = 0.5
    P[N:2 * N, 2 * N + 1] = -1.0                # entropy = -sum(logp * p)
    return jnp.asarray(P)


def prepare_fqf_params(weight, bias):
    """One-time parameter prep (keep out of the per-call hot path)."""
    N, D = weight.shape
    L = 2 * N + 2                               # lean output width (no zero padding)
    wt = jnp.asarray(weight, jnp.float32).T                 # [D, N]
    b2d = jnp.asarray(bias, jnp.float32).reshape(1, N)      # [1, N]
    proj = _build_projection(N, L)                          # [2N, L]
    return wt, b2d, proj


def fqf_kernel(x_ref, wt_ref, b_ref, proj_ref, taus_ref, tausbis_ref, ent_ref):
    N = b_ref.shape[1]

    x = x_ref[...].astype(jnp.float32)               # [TB, D] (bf16 inputs upcast here)
    wt = wt_ref[...]                                 # [D, N]  f32 (resident)
    b = b_ref[...]                                   # [1, N]  f32 (resident)

    # Linear layer (MXU) + bias.
    z = jnp.dot(x, wt, preferred_element_type=jnp.float32) + b   # [TB, N]

    # LogSoftmax along dim=1 (numerically stable); exp computed once.
    m = jnp.max(z, axis=-1, keepdims=True)
    shifted = z - m
    e = jnp.exp(shifted)                                          # [TB, N]
    sum_e = jnp.sum(e, axis=-1, keepdims=True)                    # [TB, 1]
    inv_sum = pl.reciprocal(sum_e)                                # exact 1/x (1e-5 check)
    p = e * inv_sum                                               # softmax probs
    logp = shifted - jnp.log(sum_e)                               # == log_softmax(z)
    q = logp * p                                                  # entropy terms

    # Single fused projection matmul: [TB, 2N] x [2N, 2N+2].
    pq = jnp.concatenate([p, q], axis=-1)                         # [TB, 2N]
    slab = jnp.dot(pq, proj_ref[...], preferred_element_type=jnp.float32)

    taus_ref[...] = slab[:, : N + 1]
    tausbis_ref[...] = slab[:, N + 1 : 2 * N + 1]
    ent_ref[...] = slab[:, 2 * N + 1 : 2 * N + 2]


@functools.partial(jax.jit, static_argnames=("block_b",))
def fqf_forward(x, wt, b2d, proj, *, block_b=2048):
    """x: [B, D] (f32 or bf16); wt: [D, N]; b2d: [1, N]; proj: [2N, L]."""
    B, D = x.shape
    N = wt.shape[1]
    L = proj.shape[1]

    # Batch tile: multiple of 8 sublanes, capped at block_b.  Partial final
    # tile is handled by Pallas (no wrapper-side pad).  For B > block_b the
    # grid has >=2 steps, so the "parallel" axis shards across v7x's 2 TCs.
    TB = min(block_b, _round_up(B, 8))
    grid = (pl.cdiv(B, TB),)

    cost = pl.CostEstimate(
        flops=2 * B * D * N + 2 * B * (2 * N) * L,
        transcendentals=B * (N + 1),
        bytes_accessed=(B * (D + 2 * N + 2) + D * N + N + 2 * N * L) * 4,
    )

    grid_spec = pltpu.PrefetchScalarGridSpec(
        num_scalar_prefetch=0,
        grid=grid,
        in_specs=[
            pl.BlockSpec((TB, D), lambda i: (i, 0)),       # x: tiled over batch
            pl.BlockSpec((D, N), lambda i: (0, 0)),        # W.T: resident
            pl.BlockSpec((1, N), lambda i: (0, 0)),        # bias: resident
            pl.BlockSpec((2 * N, L), lambda i: (0, 0)),    # proj: resident
        ],
        out_specs=[
            pl.BlockSpec((TB, N + 1), lambda i: (i, 0)),   # taus
            pl.BlockSpec((TB, N), lambda i: (i, 0)),       # tausBis
            pl.BlockSpec((TB, 1), lambda i: (i, 0)),       # entropy
        ],
    )

    taus, taus_bis, entropy = pl.pallas_call(
        fqf_kernel,
        out_shape=(
            jax.ShapeDtypeStruct((B, N + 1), jnp.float32),
            jax.ShapeDtypeStruct((B, N), jnp.float32),
            jax.ShapeDtypeStruct((B, 1), jnp.float32),
        ),
        grid_spec=grid_spec,
        compiler_params=pltpu.CompilerParams(
            dimension_semantics=("parallel",),
        ),
        cost_estimate=cost,
    )(x, wt, b2d, proj)

    return taus, taus_bis, entropy


def fqf_reference(x, weight, bias):
    """Pure-JAX reference mirroring the PyTorch forward."""
    z = x.astype(jnp.float32) @ weight.T + bias
    logp = jax.nn.log_softmax(z, axis=1)
    p = jnp.exp(logp)
    taus = jnp.concatenate(
        [jnp.zeros((x.shape[0], 1), jnp.float32), jnp.cumsum(p, axis=1)], axis=1
    )
    taus_bis = (taus[:, :-1] + taus[:, 1:]) / 2.0
    entropy = -jnp.sum(logp * p, axis=-1, keepdims=True)
    return taus, taus_bis, entropy


if __name__ == "__main__":
    # Small shapes consistent with the module: state embedding dim 32,
    # N = 8 quantile fractions, batch of 2.
    B, D, N = 2, 32, 8

    key = jax.random.PRNGKey(0)
    kx, kw, kb = jax.random.split(key, 3)

    x = jax.random.normal(kx, (B, D), dtype=jnp.float32)
    # Deterministic init mimicking nn.Linear's uniform(-1/sqrt(D), 1/sqrt(D)).
    bound = 1.0 / np.sqrt(D)
    weight = jax.random.uniform(kw, (N, D), minval=-bound, maxval=bound, dtype=jnp.float32)
    bias = jax.random.uniform(kb, (N,), minval=-bound, maxval=bound, dtype=jnp.float32)

    wt, b2d, proj = prepare_fqf_params(weight, bias)

    taus, taus_bis, entropy = fqf_forward(x, wt, b2d, proj)
    jax.block_until_ready((taus, taus_bis, entropy))

    taus_r, taus_bis_r, entropy_r = fqf_reference(x, weight, bias)
    np.testing.assert_allclose(np.asarray(taus), np.asarray(taus_r), rtol=1e-5, atol=1e-5)
    np.testing.assert_allclose(np.asarray(taus_bis), np.asarray(taus_bis_r), rtol=1e-5, atol=1e-5)
    np.testing.assert_allclose(np.asarray(entropy), np.asarray(entropy_r), rtol=1e-5, atol=1e-5)

    print("KERNEL_OK")
</pallas_src>

<mosaic_0001>
module attributes {stable_mosaic.version = 11 : i64} {
  func.func @fqf_kernel(%arg0: i32, %arg1: memref<8x32xf32, #tpu.memory_space<vmem>>, %arg2: memref<32x8xf32, #tpu.memory_space<vmem>>, %arg3: memref<1x8xf32, #tpu.memory_space<vmem>>, %arg4: memref<16x18xf32, #tpu.memory_space<vmem>>, %arg5: memref<8x9xf32, #tpu.memory_space<vmem>>, %arg6: memref<8x8xf32, #tpu.memory_space<vmem>>, %arg7: memref<8x1xf32, #tpu.memory_space<vmem>>) attributes {dimension_semantics = [#tpu.dimension_semantics<parallel>], iteration_bounds = array<i64: 1>, scalar_prefetch = 0 : i64, scratch_operands = 0 : i64, tpu.core_type = #tpu.core_type<tc>, window_params = [{transform_indices = @transform_0, window_bounds = array<i64: 8, 32>}, {pipeline_mode = #tpu.pipeline_mode<synchronous>, transform_indices = @transform_1, window_bounds = array<i64: 32, 8>}, {pipeline_mode = #tpu.pipeline_mode<synchronous>, transform_indices = @transform_2, window_bounds = array<i64: 1, 8>}, {pipeline_mode = #tpu.pipeline_mode<synchronous>, transform_indices = @transform_3, window_bounds = array<i64: 16, 18>}, {transform_indices = @transform_4, window_bounds = array<i64: 8, 9>}, {transform_indices = @transform_5, window_bounds = array<i64: 8, 8>}, {transform_indices = @transform_6, window_bounds = array<i64: 8, 1>}]} {
    %c0 = arith.constant 0 : index
    %c0_0 = arith.constant 0 : index
    %0 = vector.load %arg1[%c0, %c0_0] : memref<8x32xf32, #tpu.memory_space<vmem>>, vector<8x32xf32>
    %c0_1 = arith.constant 0 : index
    %c0_2 = arith.constant 0 : index
    %1 = vector.load %arg2[%c0_1, %c0_2] : memref<32x8xf32, #tpu.memory_space<vmem>>, vector<32x8xf32>
    %c0_3 = arith.constant 0 : index
    %c0_4 = arith.constant 0 : index
    %2 = vector.load %arg3[%c0_3, %c0_4] : memref<1x8xf32, #tpu.memory_space<vmem>>, vector<1x8xf32>
    %cst = arith.constant dense<0.000000e+00> : vector<8x8xf32>
    %3 = tpu.matmul %0, %1, %cst {dimension_numbers = #tpu.dot_dimension_numbers<[1], [0], [0], [1], [0, 0, 1, 1], [], []>} : vector<8x32xf32>, vector<32x8xf32>, vector<8x8xf32> -> vector<8x8xf32>
    %4 = vector.broadcast %2 : vector<1x8xf32> to vector<8x8xf32>
    %5 = arith.addf %3, %4 : vector<8x8xf32>
    %cst_5 = arith.constant dense<0xFF800000> : vector<8xf32>
    %6 = vector.multi_reduction <maximumf>, %5, %cst_5 [1] : vector<8x8xf32> to vector<8xf32>
    %7 = vector.shape_cast %6 : vector<8xf32> to vector<8x1xf32>
    %8 = vector.broadcast %7 : vector<8x1xf32> to vector<8x8xf32>
    %9 = arith.subf %5, %8 : vector<8x8xf32>
    %10 = math.exp %9 : vector<8x8xf32>
    %cst_6 = arith.constant dense<0.000000e+00> : vector<8xf32>
    %11 = vector.multi_reduction <add>, %10, %cst_6 [1] : vector<8x8xf32> to vector<8xf32>
    %12 = vector.shape_cast %11 : vector<8xf32> to vector<8x1xf32>
    %13 = tpu.reciprocal %12 : vector<8x1xf32> -> vector<8x1xf32>
    %14 = vector.broadcast %13 : vector<8x1xf32> to vector<8x8xf32>
    %15 = arith.mulf %10, %14 : vector<8x8xf32>
    %16 = math.log %12 : vector<8x1xf32>
    %17 = vector.broadcast %16 : vector<8x1xf32> to vector<8x8xf32>
    %18 = arith.subf %9, %17 : vector<8x8xf32>
    %19 = arith.mulf %18, %15 : vector<8x8xf32>
    %20 = tpu.concatenate %15, %19 in 1 : vector<8x8xf32>, vector<8x8xf32> -> vector<8x16xf32>
    %c0_7 = arith.constant 0 : index
    %c0_8 = arith.constant 0 : index
    %21 = vector.load %arg4[%c0_7, %c0_8] : memref<16x18xf32, #tpu.memory_space<vmem>>, vector<16x18xf32>
    %cst_9 = arith.constant dense<0.000000e+00> : vector<8x18xf32>
    %22 = tpu.matmul %20, %21, %cst_9 {dimension_numbers = #tpu.dot_dimension_numbers<[1], [0], [0], [1], [0, 0, 1, 1], [], []>} : vector<8x16xf32>, vector<16x18xf32>, vector<8x18xf32> -> vector<8x18xf32>
    %23 = vector.extract_strided_slice %22 {offsets = [0, 0], sizes = [8, 9], strides = [1, 1]} : vector<8x18xf32> to vector<8x9xf32>
    %c0_10 = arith.constant 0 : index
    %c0_11 = arith.constant 0 : index
    %24 = vector.load %arg5[%c0_10, %c0_11] : memref<8x9xf32, #tpu.memory_space<vmem>>, vector<8x9xf32>
    tpu.vector_store %arg5[%c0_10, %c0_11], %23 {strides = array<i32>} : memref<8x9xf32, #tpu.memory_space<vmem>>, vector<8x9xf32>,
    %25 = vector.extract_strided_slice %22 {offsets = [0, 9], sizes = [8, 8], strides = [1, 1]} : vector<8x18xf32> to vector<8x8xf32>
    %c0_12 = arith.constant 0 : index
    %c0_13 = arith.constant 0 : index
    %26 = vector.load %arg6[%c0_12, %c0_13] : memref<8x8xf32, #tpu.memory_space<vmem>>, vector<8x8xf32>
    tpu.vector_store %arg6[%c0_12, %c0_13], %25 {strides = array<i32>} : memref<8x8xf32, #tpu.memory_space<vmem>>, vector<8x8xf32>,
    %27 = vector.extract_strided_slice %22 {offsets = [0, 17], sizes = [8, 1], strides = [1, 1]} : vector<8x18xf32> to vector<8x1xf32>
    %c0_14 = arith.constant 0 : index
    %c0_15 = arith.constant 0 : index
    %28 = vector.load %arg7[%c0_14, %c0_15] : memref<8x1xf32, #tpu.memory_space<vmem>>, vector<8x1xf32>
    tpu.vector_store %arg7[%c0_14, %c0_15], %27 {strides = array<i32>} : memref<8x1xf32, #tpu.memory_space<vmem>>, vector<8x1xf32>,
    return
  }
  func.func @transform_0(%arg0: i32) -> (i32, i32) {
    %c0_i32 = arith.constant 0 : i32
    %c0_i32_0 = arith.constant 0 : i32
    return %arg0, %c0_i32 : i32, i32
  }
  func.func @transform_1(%arg0: i32) -> (i32, i32) {
    %c0_i32 = arith.constant 0 : i32
    %c0_i32_0 = arith.constant 0 : i32
    %c0_i32_1 = arith.constant 0 : i32
    return %c0_i32, %c0_i32_0 : i32, i32
  }
  func.func @transform_2(%arg0: i32) -> (i32, i32) {
    %c0_i32 = arith.constant 0 : i32
    %c0_i32_0 = arith.constant 0 : i32
    %c0_i32_1 = arith.constant 0 : i32
    return %c0_i32, %c0_i32_0 : i32, i32
  }
  func.func @transform_3(%arg0: i32) -> (i32, i32) {
    %c0_i32 = arith.constant 0 : i32
    %c0_i32_0 = arith.constant 0 : i32
    %c0_i32_1 = arith.constant 0 : i32
    return %c0_i32, %c0_i32_0 : i32, i32
  }
  func.func @transform_4(%arg0: i32) -> (i32, i32) {
    %c0_i32 = arith.constant 0 : i32
    %c0_i32_0 = arith.constant 0 : i32
    return %arg0, %c0_i32 : i32, i32
  }
  func.func @transform_5(%arg0: i32) -> (i32, i32) {
    %c0_i32 = arith.constant 0 : i32
    %c0_i32_0 = arith.constant 0 : i32
    return %arg0, %c0_i32 : i32, i32
  }
  func.func @transform_6(%arg0: i32) -> (i32, i32) {
    %c0_i32 = arith.constant 0 : i32
    %c0_i32_0 = arith.constant 0 : i32
    return %arg0, %c0_i32 : i32, i32
  }
}

</mosaic_0001>

<llo_original>
// kernel: fqf_forward.1
$region0: #{fqf_forward.1}
  #allocation0 [shape = 'u32[]', space=smem, size = 0x4, offset = 0x4, fixed_abs, tag = 'smem constant byte address 0x4 - core index']
  #allocation1 [shape = 'u32[144,128]{1,0:T(1,128)}', space=vmem, size = 0x12000, scoped, tag = 'internal scratch']
  %s0 = inlined_call_operand.vmem [shape: f32[2,32], index: 0, kind: input, shape index: {}]
  %s1 = inlined_call_operand.vmem [shape: f32[32,8], index: 1, kind: input, shape index: {}]
  %s2 = inlined_call_operand.vmem [shape: f32[1,8], index: 2, kind: input, shape index: {}]
  %s3 = inlined_call_operand.vmem [shape: f32[16,18], index: 3, kind: input, shape index: {}]
  %s4 = inlined_call_operand.hbm [shape: f32[2,9], index: 4, kind: output, shape index: {0}]
  %s5 = inlined_call_operand.hbm [shape: f32[2,8], index: 5, kind: output, shape index: {1}]
  %s6 = inlined_call_operand.vmem [shape: f32[2,1], index: 6, kind: output, shape index: {2}]
  %7 = xla_tuple %s4, %s5, %s6
  %s8 = sld [smem:[#allocation0]]
  $region72: #{fqf_forward.1} parent=0
    _
  %s10 = ssub.s32 1, %s8
  %s11 = scalar_select 0, %s10, %s8
  $region1: #{fqf_forward.1} parent=0
    #allocation2 [shape = 'u8[4096]{0}', space=vmem, size = 0x1000, scoped, tag = 'output window, operand 0, single buffered']
    #allocation3 [shape = 's32[1]{0}', space=sflag, size = 0x4, scoped, tag = 'scoped memory for fqf_forward.1']
    #allocation4 [shape = 'u8[4096]{0}', space=vmem, size = 0x1000, scoped, tag = 'output window, operand 1, single buffered']
    #allocation5 [shape = 's32[1]{0}', space=sflag, size = 0x4, scoped, tag = 'scoped memory for fqf_forward.1']
    #allocation6 [shape = 'u8[4096]{0}', space=vmem, size = 0x1000, scoped, tag = 'output window, operand 2, single buffered']
    %12 = vsyncpa [#allocation3], 0
    %13 = vsyncpa [#allocation5], 0
    // Predicated region
    $region2: #{fqf_forward.1} parent=1 // pred_check
      _
    $region3: #{fqf_forward.1} parent=1 // pred_check_branch
      %15 = sbr.rel (0) target = $region5
    $region4: #{fqf_forward.1} parent=1 // pred_region
      _
    $region5: #{fqf_forward.1} parent=1 // pred_fallthru
      _
    // Predicated region
    $region6: #{fqf_forward.1} parent=1 // pred_check
      _
    $region7: #{fqf_forward.1} parent=1 // pred_check_branch
      %17 = sbr.rel (0) target = $region9
    $region8: #{fqf_forward.1} parent=1 // pred_region
      _
    $region9: #{fqf_forward.1} parent=1 // pred_fallthru
      _
    // Predicated region
    $region10: #{fqf_forward.1} parent=1 // pred_check
      _
    $region11: #{fqf_forward.1} parent=1 // pred_check_branch
      %19 = sbr.rel (0) target = $region13
    $region12: #{fqf_forward.1} parent=1 // pred_region
      _
    $region13: #{fqf_forward.1} parent=1 // pred_fallthru
      _
    // Predicated region
    $region14: #{fqf_forward.1} parent=1 // pred_check
      _
    $region15: #{fqf_forward.1} parent=1 // pred_check_branch
      %21 = sbr.rel (0) target = $region17
    $region16: #{fqf_forward.1} parent=1 // pred_region
      _
    $region17: #{fqf_forward.1} parent=1 // pred_fallthru
      _
    %v22 = vld [vmem:[%s0] sm:$0xff]
    %v23 = vld [vmem:[%s1] sm:$0xff]
    %v24 = vld [vmem:[%s1 + $0x8] sm:$0xff]
    %v25 = vld [vmem:[%s1 + $0x10] sm:$0xff]
    %v26 = vld [vmem:[%s1 + $0x18] sm:$0xff]
    %v27 = vld [vmem:[%s2] sm:$0x1]
    %v29 = vlaneseq
    %v30 = vshrl.u32 %v29, 7
    %v31 = vsub.s32 0, %v30
    %v32 = vrot.slane %v27, %v31
    %vm34 = vcmask 261120
    %v36 = vsel %vm34, %v22, 0
    %38 = vmatprep.subr.mxu0 0.0
    %39 = vmatpush1.msra.mxu0 0.0
    %40 = vmatprep.subr.mxu0 0.0
    %41 = vmatpush1.msra.mxu0 0.0
    %42 = vmatprep.subr.mxu0 0.0
    %43 = vmatpush1.msra.mxu0 0.0
    %44 = vmatprep.subr.mxu0 0.0
    %45 = vmatpush1.msra.mxu0 0.0
    %46 = vmatprep.subr.mxu0 0.0
    %47 = vmatpush1.msra.mxu0 0.0
    %48 = vmatprep.subr.mxu0 0.0
    %49 = vmatpush1.msra.mxu0 0.0
    %50 = vmatprep.subr.mxu0 0.0
    %51 = vmatpush1.msra.mxu0 0.0
    %52 = vmatprep.subr.mxu0 0.0
    %53 = vmatpush1.msra.mxu0 0.0
    %54 = vmatprep.subr.mxu0 0.0
    %55 = vmatpush1.msra.mxu0 0.0
    %56 = vmatprep.subr.mxu0 0.0
    %57 = vmatpush1.msra.mxu0 0.0
    %58 = vmatprep.subr.mxu0 0.0
    %59 = vmatpush1.msra.mxu0 0.0
    %60 = vmatprep.subr.mxu0 0.0
    %61 = vmatpush1.msra.mxu0 0.0
    %62 = vmatprep.subr.mxu0 0.0
    %63 = vmatpush1.msra.mxu0 %v26
    %64 = vmatprep.subr.mxu0 0.0
    %65 = vmatpush1.msra.mxu0 %v25
    %66 = vmatprep.subr.mxu0 0.0
    %67 = vmatpush1.msra.mxu0 %v24
    %68 = vmatprep.subr.mxu0 0.0
    %69 = vmatpush1.msra.mxu0 %v23
    %70 = vmatprep.subr.mxu0 0.0
    %71 = vmatpush2.msra.mxu0 0.0
    %72 = vmatprep.subr.mxu0 0.0
    %73 = vmatpush2.msra.mxu0 0.0
    %74 = vmatprep.subr.mxu0 0.0
    %75 = vmatpush2.msra.mxu0 0.0
    %76 = vmatprep.subr.mxu0 0.0
    %77 = vmatpush2.msra.mxu0 0.0
    %78 = vmatprep.subr.mxu0 0.0
    %79 = vmatpush2.msra.mxu0 0.0
    %80 = vmatprep.subr.mxu0 0.0
    %81 = vmatpush2.msra.mxu0 0.0
    %82 = vmatprep.subr.mxu0 0.0
    %83 = vmatpush2.msra.mxu0 0.0
    %84 = vmatprep.subr.mxu0 0.0
    %85 = vmatpush2.msra.mxu0 0.0
    %86 = vmatprep.subr.mxu0 0.0
    %87 = vmatpush2.msra.mxu0 0.0
    %88 = vmatprep.subr.mxu0 0.0
    %89 = vmatpush2.msra.mxu0 0.0
    %90 = vmatprep.subr.mxu0 0.0
    %91 = vmatpush2.msra.mxu0 0.0
    %92 = vmatprep.subr.mxu0 0.0
    %93 = vmatpush2.msra.mxu0 0.0
    %94 = vmatprep.subr.mxu0 0.0
    %95 = vmatpush2.msra.mxu0 0.0
    %96 = vmatprep.subr.mxu0 0.0
    %97 = vmatpush2.msra.mxu0 0.0
    %98 = vmatprep.subr.mxu0 0.0
    %99 = vmatpush2.msra.mxu0 0.0
    %100 = vmatprep.subr.mxu0 0.0
    %101 = vmatpush2.msra.mxu0 0.0
    %102 = vmatprep.mubr.f32.mxu0 0.0
    %103 = vmatmul.mubr.f32.gmra.mxu0 %v36
    %v104 = vpop.f32.mrf.mxu0
    %v105 = vadd.f32 %v32, %v104
    %v106 = vpop.f32.mrf.mxu0
    %107 = vdwg.mxu0
    %vm108 = vcmask 64512
    %v109 = vsel %vm108, %v105, -inf
    %110 = vmax.xlane.f32.xlu0 %v109
    %v111 = vpop.xlane.xlu0 %110
    %v112 = vsub.f32 %v105, %v111
    %v113 = vmul.f32 %v112, 1.442695
    %v114 = vpow.pop %v113
    %v115 = vsel %vm108, %v114, 0.0
    %116 = vadd.xlane.f32.xlu0 %v115
    %v117 = vpop.xlane.xlu0 %116
    %v118 = vrcp.pop %v117
    %v119 = vmul.f32 %v114, %v118
    %v120 = vlog2.pop %v117
    %v121 = vmul.f32 %v120, 0.6931472
    %v122 = vsub.f32 %v112, %v121
    %v123 = vmul.f32 %v122, %v119
    %125 = vrot.lane.b32.xlu0 %v123, 8
    %v126 = vpop.permute.xlu0 %125
    %v128 = vsel %vm108, %v119, %v126
    %v129 = vld [vmem:[%s3] sm:$0xff]
    %v130 = vld [vmem:[%s3 + $0x8] sm:$0xff]
    %vm131 = vcmask 130048
    %v133 = vsel %vm131, %v128, 0
    %135 = vmatprep.subr.mxu0 0.0
    %136 = vmatpush1.msra.mxu0 0.0
    %137 = vmatprep.subr.mxu0 0.0
    %138 = vmatpush1.msra.mxu0 0.0
    %139 = vmatprep.subr.mxu0 0.0
    %140 = vmatpush1.msra.mxu0 0.0
    %141 = vmatprep.subr.mxu0 0.0
    %142 = vmatpush1.msra.mxu0 0.0
    %143 = vmatprep.subr.mxu0 0.0
    %144 = vmatpush1.msra.mxu0 0.0
    %145 = vmatprep.subr.mxu0 0.0
    %146 = vmatpush1.msra.mxu0 0.0
    %147 = vmatprep.subr.mxu0 0.0
    %148 = vmatpush1.msra.mxu0 0.0
    %149 = vmatprep.subr.mxu0 0.0
    %150 = vmatpush1.msra.mxu0 0.0
    %151 = vmatprep.subr.mxu0 0.0
    %152 = vmatpush1.msra.mxu0 0.0
    %153 = vmatprep.subr.mxu0 0.0
    %154 = vmatpush1.msra.mxu0 0.0
    %155 = vmatprep.subr.mxu0 0.0
    %156 = vmatpush1.msra.mxu0 0.0
    %157 = vmatprep.subr.mxu0 0.0
    %158 = vmatpush1.msra.mxu0 0.0
    %159 = vmatprep.subr.mxu0 0.0
    %160 = vmatpush1.msra.mxu0 0.0
    %161 = vmatprep.subr.mxu0 0.0
    %162 = vmatpush1.msra.mxu0 0.0
    %163 = vmatprep.subr.mxu0 0.0
    %164 = vmatpush1.msra.mxu0 %v130
    %165 = vmatprep.subr.mxu0 0.0
    %166 = vmatpush1.msra.mxu0 %v129
    %167 = vmatprep.subr.mxu0 0.0
    %168 = vmatpush2.msra.mxu0 0.0
    %169 = vmatprep.subr.mxu0 0.0
    %170 = vmatpush2.msra.mxu0 0.0
    %171 = vmatprep.subr.mxu0 0.0
    %172 = vmatpush2.msra.mxu0 0.0
    %173 = vmatprep.subr.mxu0 0.0
    %174 = vmatpush2.msra.mxu0 0.0
    %175 = vmatprep.subr.mxu0 0.0
    %176 = vmatpush2.msra.mxu0 0.0
    %177 = vmatprep.subr.mxu0 0.0
    %178 = vmatpush2.msra.mxu0 0.0
    %179 = vmatprep.subr.mxu0 0.0
    %180 = vmatpush2.msra.mxu0 0.0
    %181 = vmatprep.subr.mxu0 0.0
    %182 = vmatpush2.msra.mxu0 0.0
    %183 = vmatprep.subr.mxu0 0.0
    %184 = vmatpush2.msra.mxu0 0.0
    %185 = vmatprep.subr.mxu0 0.0
    %186 = vmatpush2.msra.mxu0 0.0
    %187 = vmatprep.subr.mxu0 0.0
    %188 = vmatpush2.msra.mxu0 0.0
    %189 = vmatprep.subr.mxu0 0.0
    %190 = vmatpush2.msra.mxu0 0.0
    %191 = vmatprep.subr.mxu0 0.0
    %192 = vmatpush2.msra.mxu0 0.0
    %193 = vmatprep.subr.mxu0 0.0
    %194 = vmatpush2.msra.mxu0 0.0
    %195 = vmatprep.subr.mxu0 0.0
    %196 = vmatpush2.msra.mxu0 0.0
    %197 = vmatprep.subr.mxu0 0.0
    %198 = vmatpush2.msra.mxu0 0.0
    %199 = vmatprep.mubr.f32.mxu0 0.0
    %200 = vmatmul.mubr.f32.gmra.mxu0 %v133
    %v201 = vpop.f32.mrf.mxu0
    %v202 = vadd.f32 0.0, %v201
    %v203 = vpop.f32.mrf.mxu0
    %204 = vdwg.mxu0
    %vm205 = vcmask 72704
    %206 = vst.msk [vmem:[#allocation2] sm:$0xff] %vm205, %v202
    %208 = vrot.lane.b32.xlu0 %v202, 119
    %v209 = vpop.permute.xlu0 %208
    %211 = vst.msk [vmem:[#allocation4] sm:$0xff] %vm108, %v209
    %212 = vrot.lane.b32.xlu0 %v202, 111
    %v213 = vpop.permute.xlu0 %212
    %vm215 = vcmask 7168
    %216 = vst.msk [vmem:[#allocation6] sm:$0xff] %vm215, %v213
    // Predicated region
    $region18: #{fqf_forward.1} parent=1 // pred_check
      _
    $region19: #{fqf_forward.1} parent=1 // pred_check_branch
      %218 = sbr.rel (0) target = $region21
    $region20: #{fqf_forward.1} parent=1 // pred_region
      %s220 = ssub.s32 128, 32
      %221 = vsyncadd [#allocation3], %s220
      %s222 = sshll.u32 [#allocation2], 4
      %s223 = int_to_ptr.vmem [resolvable:$true] %s222
      %228 = dma.vmem_to_hbm [thread:$0]  %s223, 32, %s4, [#allocation3], 32, 32, 2
    $region21: #{fqf_forward.1} parent=1 // pred_fallthru
      _
    // Predicated region
    $region22: #{fqf_forward.1} parent=1 // pred_check
      _
    $region23: #{fqf_forward.1} parent=1 // pred_check_branch
      %230 = sbr.rel (0) target = $region25
    $region24: #{fqf_forward.1} parent=1 // pred_region
      %s232 = ssub.s32 128, 32
      %233 = vsyncadd [#allocation5], %s232
      %s234 = sshll.u32 [#allocation4], 4
      %s235 = int_to_ptr.vmem [resolvable:$true] %s234
      %240 = dma.vmem_to_hbm [thread:$0]  %s235, 32, %s5, [#allocation5], 32, 32, 2
    $region25: #{fqf_forward.1} parent=1 // pred_fallthru
      _
    // Predicated region
    $region26: #{fqf_forward.1} parent=1 // pred_check
      _
    $region27: #{fqf_forward.1} parent=1 // pred_check_branch
      %242 = sbr.rel (0) target = $region29
    $region28: #{fqf_forward.1} parent=1 // pred_region
      // Predicated region
      $region30: #{fqf_forward.1} parent=28 // pred_check
        _
      $region31: #{fqf_forward.1} parent=28 // pred_check_branch
        %244 = sbr.rel (0) target = $region33
      $region32: #{fqf_forward.1} parent=28 // pred_region
        // Predicated region
        $region34: #{fqf_forward.1} parent=32 // pred_check
          _
        $region35: #{fqf_forward.1} parent=32 // pred_check_branch
          %246 = sbr.rel target = $region37
        $region36: #{fqf_forward.1} parent=32 // pred_region
          // Predicated region
          $region49: #{fqf_forward.1} parent=36 // pred_check
            _
          $region50: #{fqf_forward.1} parent=36 // pred_check_branch
            %262 = sbr.rel (0) target = $region52
          $region51: #{fqf_forward.1} parent=36 // pred_region
            %s264 = ssub.s32 4, 1
            loop: start=0, step=1, limit=1
            $region53: #{fqf_forward.1} parent=51 // loop_pre_header
              _
            $region54: #{fqf_forward.1} parent=51 // loop_header
              %s266 = sphi 0, %s270
              %p267 = scmp.ge.s32.totalorder %s266, 1
              %s271 = sphi [#allocation6], [#allocation6]
              %s272 = sphi %s6, %s6
            $region55: #{fqf_forward.1} parent=51 // loop_header_branch
              %269 = sbr.rel (%p267) target = $region59
            $region56: #{fqf_forward.1} parent=51 // loop_body
              %v273 = vld [vmem:[%s271] sm:%s264]
              %274 = vst [vmem:[%s272] sm:%s264] %v273
            $region57: #{fqf_forward.1} parent=51 // loop_footer
              %s270 = sadd.s32 1, %s266
            $region58: #{fqf_forward.1} parent=51 // loop_footer_branch
              %265 = sbr.rel target = $region54
            $region59: #{fqf_forward.1} parent=51 // loop_exit
              _
          $region52: #{fqf_forward.1} parent=36 // pred_fallthru
            _
        $region37: #{fqf_forward.1} parent=32 // pred_fallthru
          _
        // Predicated region
        $region38: #{fqf_forward.1} parent=32 // pred_check
          _
        $region39: #{fqf_forward.1} parent=32 // pred_check_branch
          %248 = sbr.rel (0) target = $region41
        $region40: #{fqf_forward.1} parent=32 // pred_region
          %s250 = ssub.s32 4, 1
          loop: start=0, step=1, limit=1
          $region42: #{fqf_forward.1} parent=40 // loop_pre_header
            _
          $region43: #{fqf_forward.1} parent=40 // loop_header
            %s252 = sphi 0, %s256
            %p253 = scmp.ge.s32.totalorder %s252, 1
            %s257 = sphi [#allocation6], [#allocation6]
            %s258 = sphi %s6, %s6
          $region44: #{fqf_forward.1} parent=40 // loop_header_branch
            %255 = sbr.rel (%p253) target = $region48
          $region45: #{fqf_forward.1} parent=40 // loop_body
            %v259 = vld [vmem:[%s257] sm:%s250]
            %260 = vst [vmem:[%s258] sm:%s250] %v259
          $region46: #{fqf_forward.1} parent=40 // loop_footer
            %s256 = sadd.s32 1, %s252
          $region47: #{fqf_forward.1} parent=40 // loop_footer_branch
            %251 = sbr.rel target = $region43
          $region48: #{fqf_forward.1} parent=40 // loop_exit
            _
        $region41: #{fqf_forward.1} parent=32 // pred_fallthru
          _
      $region33: #{fqf_forward.1} parent=28 // pred_fallthru
        _
      %275 = vnop
    $region29: #{fqf_forward.1} parent=1 // pred_fallthru
      _
    // Predicated region
    $region60: #{fqf_forward.1} parent=1 // pred_check
      _
    $region61: #{fqf_forward.1} parent=1 // pred_check_branch
      %277 = sbr.rel (0) target = $region63
    $region62: #{fqf_forward.1} parent=1 // pred_region
      %278 = dma.done [#allocation3], 128
    $region63: #{fqf_forward.1} parent=1 // pred_fallthru
      _
    // Predicated region
    $region64: #{fqf_forward.1} parent=1 // pred_check
      _
    $region65: #{fqf_forward.1} parent=1 // pred_check_branch
      %280 = sbr.rel (0) target = $region67
    $region66: #{fqf_forward.1} parent=1 // pred_region
      %281 = dma.done [#allocation5], 128
    $region67: #{fqf_forward.1} parent=1 // pred_fallthru
      _
    // Predicated region
    $region68: #{fqf_forward.1} parent=1 // pred_check
      _
    $region69: #{fqf_forward.1} parent=1 // pred_check_branch
      %283 = sbr.rel (0) target = $region71
    $region70: #{fqf_forward.1} parent=1 // pred_region
      _
    $region71: #{fqf_forward.1} parent=1 // pred_fallthru
      _
    %284 = vsyncpa [#allocation3], 1
    %285 = vsyncpa [#allocation5], 1

</llo_original>
